<compile_context>
chip_gen: v6e
topology: v6e:2x2x1
jax: 0.10.0
libtpu: 0.0.40
codegen_flags: <defaults>
</compile_context>

<pallas_src>
import itertools
from functools import lru_cache

import numpy as np
import jax
import jax.numpy as jnp
from jax.experimental import pallas as pl
from jax.experimental.pallas import tpu as pltpu

# ----------------------------------------------------------------------------
# synthetic configs (stand-ins for dataset_config / model_config)
# ----------------------------------------------------------------------------
dataset_config = {"num_classes": 8, "bg_class_idx": 7}
model_config = {
    "decoder_layers": 2,
    "num_queries": 8,
    "cls_cost_weight": 1.0,
    "l1_cost_weight": 5.0,
    "giou_cost_weight": 2.0,
    "bg_class_weight": 0.1,
    "nms_threshold": 0.5,
}

_GIOU_LOSS_EPS = 1e-7    # matches torchvision.ops.generalized_box_iou_loss default eps
_COST_GIOU_EPS = 1e-7    # guards the approx reciprocals in the matching cost (no NaN)
_LANES = 128
_SUBLANES = 8
_OUT_LANES = 128


def _round_up(x, m):
    return ((int(x) + m - 1) // m) * m


# ----------------------------------------------------------------------------
# Pallas kernel 1: Hungarian-matching cost for ALL decoder layers, fused (no grid)
#   cost[t, q] for q over L*B*Q flattened queries, t over padded concatenated targets
# ----------------------------------------------------------------------------
def _make_cost_kernel(C, cls_w, l1_w, giou_w):
    def cost_kernel(logits_ref, pbox_ref, tlab_ref, tbox_ref, cost_ref):
        # logits_ref (C, NQ)  f32   NQ = L*B*Q padded to 128 lanes
        # pbox_ref   (4, NQ)  f32   pred xyxy, coordinate-major, lane-dense
        # tlab_ref   (Tp, 1)  i32   concatenated target labels (padding = -1)
        # tbox_ref   (Tp, 4)  f32   concatenated target xyxy  (padding = unit boxes)
        # cost_ref   (Tp, NQ) bf16  Hungarian cost, target-major
        lg = logits_ref[...]
        labels = tlab_ref[...]

        # ---- classification cost: -cls_w * softmax(logits)[labels[t], q] ----
        if C <= 16:
            # small C: numerically-stable softmax built from C sublane-row slices +
            # C-step VPU select-accumulate (avoids a degenerate K=C MXU matmul).
            mx = lg[0:1, :]
            for c in range(1, C):
                mx = jnp.maximum(mx, lg[c:c + 1, :])
            ex_rows = [jnp.exp(lg[c:c + 1, :] - mx) for c in range(C)]
            denom = ex_rows[0]
            for c in range(1, C):
                denom = denom + ex_rows[c]
            inv_denom = pl.reciprocal(denom, approx=True)           # (1, NQ)
            sel = (labels == 0).astype(jnp.float32) * ex_rows[0]
            for c in range(1, C):
                sel = sel + (labels == c).astype(jnp.float32) * ex_rows[c]
            cost = sel * (inv_denom * (-cls_w))                     # (Tp, NQ)
        else:
            # large C (real DETR, C~92): softmax + onehot (Tp,C) @ prob (C,NQ) on the MXU.
            mx = jnp.max(lg, axis=0, keepdims=True)
            ex = jnp.exp(lg - mx)
            prob = ex * pl.reciprocal(jnp.sum(ex, axis=0, keepdims=True), approx=True)
            onehot = (jax.lax.broadcasted_iota(jnp.int32, (labels.shape[0], C), 1)
                      == labels).astype(jnp.float32)
            cost = (-cls_w) * jnp.dot(onehot, prob,
                                      preferred_element_type=jnp.float32)

        # ---- pairwise L1 + GIoU, accumulated in place into `cost` ----
        pb = pbox_ref[...]                                          # (4, NQ)
        px1, py1, px2, py2 = pb[0:1, :], pb[1:2, :], pb[2:3, :], pb[3:4, :]   # (1, NQ)
        tb = tbox_ref[...]                                          # (Tp, 4)
        tx1, ty1, tx2, ty2 = tb[:, 0:1], tb[:, 1:2], tb[:, 2:3], tb[:, 3:4]   # (Tp, 1)

        cost = cost + l1_w * (jnp.abs(px1 - tx1) + jnp.abs(py1 - ty1)
                              + jnp.abs(px2 - tx2) + jnp.abs(py2 - ty2))

        area_p = (px2 - px1) * (py2 - py1)                          # (1, NQ)
        area_t = (tx2 - tx1) * (ty2 - ty1)                          # (Tp, 1)
        iw = jnp.maximum(jnp.minimum(px2, tx2) - jnp.maximum(px1, tx1), 0.0)
        ih = jnp.maximum(jnp.minimum(py2, ty2) - jnp.maximum(py1, ty1), 0.0)
        inter = iw * ih
        union = area_p + area_t - inter
        iou = inter * pl.reciprocal(union + _COST_GIOU_EPS, approx=True)
        area_c = ((jnp.maximum(px2, tx2) - jnp.minimum(px1, tx1))
                  * (jnp.maximum(py2, ty2) - jnp.minimum(py1, ty1)))
        giou = iou - (area_c - union) * pl.reciprocal(area_c + _COST_GIOU_EPS, approx=True)
        cost = cost - giou_w * giou

        # bf16 store: halves D2H bytes feeding the host assignment solver.
        cost_ref[...] = cost.astype(cost_ref.dtype)

    return cost_kernel


# ----------------------------------------------------------------------------
# Pallas kernel 2: per-layer losses for ALL decoder layers, fused (no grid)
#   out[0, l, :] = weighted CE * cls_w ; out[1, l, :] = L1 * l1_w + GIoU * giou_w
# ----------------------------------------------------------------------------
def _make_loss_kernel(cls_w, l1_w, giou_w, num_items, num_matched, valid_matches):
    inv_items = 1.0 / float(num_items)
    inv_matched = 1.0 / float(max(num_matched, 1))

    def loss_kernel(logits_ref, wonehot_ref, pbox_ref, tbox_ref, out_ref):
        # logits_ref  (L, BQ, C) f32
        # wonehot_ref (L, BQ, C) f32  = one_hot(target class) * class_weight (lane-dense)
        # pbox_ref    (4, L, Mp) f32  matched pred xyxy (coordinate-major, lane-dense)
        # tbox_ref    (4, L, Mp) f32  matched target xyxy
        # out_ref     (2, L, OUT) f32 row 0: cls loss per layer, row 1: box loss per layer
        L = logits_ref.shape[0]
        out_lanes = out_ref.shape[-1]

        logits = logits_ref[...]
        mx = jnp.max(logits, axis=-1, keepdims=True)
        lse = jnp.log(jnp.sum(jnp.exp(logits - mx), axis=-1, keepdims=True)) + mx
        logsm = logits - lse                                        # log_softmax
        ce = -jnp.sum(wonehot_ref[...] * logsm, axis=-1)            # (L, BQ)
        # reference: F.cross_entropy(..., reduction='none') then .mean() over B*Q
        cls_layer = jnp.sum(ce, axis=-1, keepdims=True) * (inv_items * cls_w)   # (L, 1)

        pb = pbox_ref[...]
        tb = tbox_ref[...]
        px1, py1, px2, py2 = pb[0], pb[1], pb[2], pb[3]             # (L, Mp)
        tx1, ty1, tx2, ty2 = tb[0], tb[1], tb[2], tb[3]
        Mp = px1.shape[-1]
        mask = (jax.lax.broadcasted_iota(jnp.int32, (L, Mp), 1)
                < valid_matches).astype(jnp.float32)

        l1 = (jnp.abs(px1 - tx1) + jnp.abs(py1 - ty1)
              + jnp.abs(px2 - tx2) + jnp.abs(py2 - ty2)) * mask

        area_p = (px2 - px1) * (py2 - py1)
        area_t = (tx2 - tx1) * (ty2 - ty1)
        iw = jnp.maximum(jnp.minimum(px2, tx2) - jnp.maximum(px1, tx1), 0.0)
        ih = jnp.maximum(jnp.minimum(py2, ty2) - jnp.maximum(py1, ty1), 0.0)
        inter = iw * ih
        union = area_p + area_t - inter
        iou = inter / (union + _GIOU_LOSS_EPS)
        area_c = ((jnp.maximum(px2, tx2) - jnp.minimum(px1, tx1))
                  * (jnp.maximum(py2, ty2) - jnp.minimum(py1, ty1)))
        giou = iou - (area_c - union) / (area_c + _GIOU_LOSS_EPS)
        loss_giou = (1.0 - giou) * mask

        l1_mean = jnp.sum(l1, axis=-1, keepdims=True) * inv_matched         # (L, 1)
        giou_mean = jnp.sum(loss_giou, axis=-1, keepdims=True) * inv_matched
        box_layer = l1_mean * l1_w + giou_mean * giou_w                      # (L, 1)

        # direct row stores (no sublane concatenate)
        out_ref[0] = jnp.broadcast_to(cls_layer, (L, out_lanes))
        out_ref[1] = jnp.broadcast_to(box_layer, (L, out_lanes))

    return loss_kernel


# ----------------------------------------------------------------------------
# cached jitted pallas_call builders (keyed on static shapes + weights)
# ----------------------------------------------------------------------------
@lru_cache(maxsize=None)
def _build_cost_fn(L, B, Q, C, T_pad, cls_w, l1_w, giou_w):
    NQ = L * B * Q
    NQ_pad = _round_up(NQ, _LANES)
    kernel = _make_cost_kernel(C, cls_w, l1_w, giou_w)
    spec = pl.BlockSpec(memory_space=pltpu.MemorySpace.VMEM)
    call = pl.pallas_call(
        kernel,
        out_shape=jax.ShapeDtypeStruct((T_pad, NQ_pad), jnp.bfloat16),
        in_specs=[spec, spec, spec, spec],
        out_specs=spec,
    )
    # TODO(synk): at real DETR sizes (L=6, B*Q~2400, T~O(100)) re-introduce a grid over
    # L / BQ tiles and set pltpu.CompilerParams(vmem_limit_bytes=...) so the fused blocks
    # fit v7x's 64 MiB VMEM; at these shapes a single program fits trivially.

    def fn(pred_classes, pred_bboxes, tlab, tbox):
        logits_t = pred_classes.reshape(NQ, C).astype(jnp.float32).T        # (C, NQ)
        boxes = pred_bboxes.reshape(NQ, 4).astype(jnp.float32)
        cx, cy, w, h = boxes[:, 0], boxes[:, 1], boxes[:, 2], boxes[:, 3]
        pxyxy = jnp.stack([cx - 0.5 * w, cy - 0.5 * h,
                           cx + 0.5 * w, cy + 0.5 * h], axis=0)             # (4, NQ)
        pad = NQ_pad - NQ
        if pad:
            logits_t = jnp.pad(logits_t, ((0, 0), (0, pad)))
            pxyxy = jnp.pad(pxyxy, ((0, 0), (0, pad)))
        return call(logits_t, pxyxy, tlab, tbox)

    return jax.jit(fn)


@lru_cache(maxsize=None)
def _build_loss_fn(L, B, Q, C, M, M_pad, bg_idx, bg_weight, cls_w, l1_w, giou_w):
    BQ = B * Q
    kernel = _make_loss_kernel(cls_w, l1_w, giou_w,
                               num_items=BQ, num_matched=M, valid_matches=M)
    spec = pl.BlockSpec(memory_space=pltpu.MemorySpace.VMEM)
    call = pl.pallas_call(
        kernel,
        out_shape=jax.ShapeDtypeStruct((2, L, _OUT_LANES), jnp.float32),
        in_specs=[spec, spec, spec, spec],
        out_specs=spec,
    )
    cls_weights_np = np.ones((C,), np.float32)
    cls_weights_np[bg_idx] = bg_weight
    cls_weights = jnp.asarray(cls_weights_np)

    def fn(pred_classes, pred_bboxes, idx_pack, mtgt):
        logits = pred_classes.reshape(L, BQ, C).astype(jnp.float32)
        tcls = idx_pack[:, :BQ]                                      # (L, BQ)  i32
        midx = idx_pack[:, BQ:]                                      # (L, M_pad) i32
        wonehot = jax.nn.one_hot(tcls, C, dtype=jnp.float32) * cls_weights
        boxes = pred_bboxes.reshape(L, BQ, 4).astype(jnp.float32)
        g = boxes[jnp.arange(L)[:, None], midx]                      # (L, M_pad, 4) cxcywh
        cx, cy, w, h = g[..., 0], g[..., 1], g[..., 2], g[..., 3]
        pxyxy = jnp.stack([cx - 0.5 * w, cy - 0.5 * h,
                           cx + 0.5 * w, cy + 0.5 * h], axis=0)      # (4, L, M_pad)
        txyxy = jnp.transpose(mtgt.astype(jnp.float32), (2, 0, 1))   # (4, L, M_pad)
        return call(logits, wonehot, pxyxy, txyxy)

    return jax.jit(fn)


# ----------------------------------------------------------------------------
# host-side exact assignment (replacement for scipy.optimize.linear_sum_assignment)
# ----------------------------------------------------------------------------
def _linear_sum_assignment_exact(cost):
    # TODO(synk): exact brute force is fine for the small per-image target counts here;
    # swap in Jonker-Volgenant/auction for real DETR sizes (Q=100-300).
    cost = np.asarray(cost, dtype=np.float64)
    num_rows, num_cols = cost.shape
    best_perm, best_val = None, np.inf
    cols = np.arange(num_cols)
    for perm in itertools.permutations(range(num_rows), num_cols):
        val = cost[list(perm), cols].sum()
        if val < best_val:
            best_val, best_perm = val, perm
    pred_inds = np.asarray(best_perm, dtype=np.int64)
    tgt_inds = cols.astype(np.int64)
    order = np.argsort(pred_inds)  # match scipy's row-sorted output ordering
    return pred_inds[order], tgt_inds[order]


# ----------------------------------------------------------------------------
# DETRLoss (training path)
# ----------------------------------------------------------------------------
class DETRLossPallas:
    def __init__(self,
                 num_classes=dataset_config["num_classes"],
                 decoder_layers=model_config["decoder_layers"],
                 num_queries=model_config["num_queries"],
                 cls_cost_weight=model_config["cls_cost_weight"],
                 l1_cost_weight=model_config["l1_cost_weight"],
                 giou_cost_weight=model_config["giou_cost_weight"],
                 bg_class_idx=dataset_config["bg_class_idx"],
                 bg_class_weight=model_config["bg_class_weight"],
                 nms_threshold=model_config["nms_threshold"]):
        self.num_classes = num_classes
        self.num_decoder_layers = decoder_layers
        self.num_queries = num_queries
        self.cls_cost_weight = float(cls_cost_weight)
        self.l1_cost_weight = float(l1_cost_weight)
        self.giou_cost_weight = float(giou_cost_weight)
        self.bg_class_idx = int(bg_class_idx)
        self.bg_class_weight = float(bg_class_weight)
        self.nms_threshold = nms_threshold

    # ---- host-side target prep (once per forward, shared across layers) ----
    def _prepare_targets(self, targets):
        labels_np = [np.asarray(t["labels"]).astype(np.int64) for t in targets]
        boxes_np = [np.asarray(t["boxes"]).astype(np.float32) for t in targets]
        nt = [int(x.shape[0]) for x in labels_np]
        T = int(sum(nt))
        # TODO(synk): zero-target batches return 0 box loss instead of the reference's NaN.
        T_pad = _round_up(max(T, 1), _SUBLANES)
        lab = np.full((T_pad, 1), -1, np.int32)                 # -1 never matches a class
        tb = np.tile(np.array([0.0, 0.0, 1.0, 1.0], np.float32), (T_pad, 1))
        if T:
            lab[:T, 0] = np.concatenate(labels_np).astype(np.int32)
            tb[:T] = np.concatenate(boxes_np, axis=0)
        return labels_np, boxes_np, nt, T, T_pad, jnp.asarray(lab), jnp.asarray(tb)

    # ---- batched device paths ---------------------------------------------
    def _cost_all_layers(self, cls_stack, box_stack, tlab_dev, tbox_dev, T_pad):
        L, B, Q, C = (int(s) for s in cls_stack.shape)
        fn = _build_cost_fn(L, B, Q, C, int(T_pad),
                            self.cls_cost_weight, self.l1_cost_weight, self.giou_cost_weight)
        return fn(cls_stack, box_stack, tlab_dev, tbox_dev)

    def _assign_all(self, cost_host, nt, L, B, Q):
        # cost_host: (T_pad, L*B*Q_pad) float32, target-major
        offsets = np.concatenate([[0], np.cumsum(nt)]).astype(np.int64)
        match_indices = []
        for l in range(L):
            per_image = []
            for b in range(B):
                col0 = (l * B + b) * Q
                blk = cost_host[offsets[b]:offsets[b + 1], col0:col0 + Q]  # (nt_b, Q)
                per_image.append(_linear_sum_assignment_exact(blk.T))
            match_indices.append(per_image)
        return match_indices

    def _losses_all_layers(self, cls_stack, box_stack, labels_np, boxes_np, nt, match_indices):
        L, B, Q, C = (int(s) for s in cls_stack.shape)
        BQ = B * Q
        M = int(sum(nt))
        M_pad = _round_up(max(M, 1), _LANES)

        tcls = np.full((L, BQ), self.bg_class_idx, np.int32)
        midx = np.zeros((L, M_pad), np.int32)
        mtgt = np.tile(np.array([0.0, 0.0, 1.0, 1.0], np.float32), (L, M_pad, 1))
        for l in range(L):
            col = 0
            for b in range(B):
                pred_idx, tgt_idx = match_indices[l][b]
                nb = int(len(pred_idx))
                if nb == 0:
                    continue
                pred_idx = np.asarray(pred_idx)
                tgt_idx = np.asarray(tgt_idx)
                tcls[l, b * Q + pred_idx] = labels_np[b][tgt_idx].astype(np.int32)
                midx[l, col:col + nb] = (b * Q + pred_idx).astype(np.int32)
                mtgt[l, col:col + nb, :] = boxes_np[b][tgt_idx]
                col += nb

        # one packed int32 H2D transfer: [target classes | matched pred indices]
        idx_pack = np.concatenate([tcls, midx], axis=1).astype(np.int32)

        fn = _build_loss_fn(L, B, Q, C, M, M_pad, self.bg_class_idx, self.bg_class_weight,
                            self.cls_cost_weight, self.l1_cost_weight, self.giou_cost_weight)
        return fn(cls_stack, box_stack, jnp.asarray(idx_pack), jnp.asarray(mtgt))

    # ---- per-layer API parity wrappers -------------------------------------
    def compute_hungarian_matching(self, pred_logits, pred_boxes, targets):
        labels_np, boxes_np, nt, T, T_pad, tlab_dev, tbox_dev = self._prepare_targets(targets)
        cls_stack = jnp.asarray(pred_logits)[None]
        box_stack = jnp.asarray(pred_boxes)[None]
        B, Q = int(cls_stack.shape[1]), int(cls_stack.shape[2])
        cost_dev = self._cost_all_layers(cls_stack, box_stack, tlab_dev, tbox_dev, T_pad)
        cost_host = np.asarray(jax.device_get(cost_dev)).astype(np.float32)
        return self._assign_all(cost_host, nt, 1, B, Q)[0]

    def compute_losses(self, pred_logits, pred_boxes, targets, match_indices):
        labels_np, boxes_np, nt, _, _, _, _ = self._prepare_targets(targets)
        loss_dev = self._losses_all_layers(jnp.asarray(pred_logits)[None],
                                           jnp.asarray(pred_boxes)[None],
                                           labels_np, boxes_np, nt, [match_indices])
        return loss_dev[0, 0, 0], loss_dev[1, 0, 0]

    # ---- forward ------------------------------------------------------------
    def forward(self, pred_classes, pred_bboxes, targets, training=True,
                score_thresh=0.0, use_nms=False):
        detr_output = {}
        if training:
            L = self.num_decoder_layers
            cls_stack = jnp.asarray(pred_classes)[:L]
            box_stack = jnp.asarray(pred_bboxes)[:L]
            B, Q = int(cls_stack.shape[1]), int(cls_stack.shape[2])

            labels_np, boxes_np, nt, T, T_pad, tlab_dev, tbox_dev = self._prepare_targets(targets)

            # stage 1: ONE fused pallas_call -> bf16 (T_pad, L*B*Q) cost + ONE D2H copy
            cost_dev = self._cost_all_layers(cls_stack, box_stack, tlab_dev, tbox_dev, T_pad)
            cost_host = np.asarray(jax.device_get(cost_dev)).astype(np.float32)

            match_indices = self._assign_all(cost_host, nt, L, B, Q)

            # stage 2: ONE fused pallas_call -> (2, L, 128) per-layer losses
            loss_dev = self._losses_all_layers(cls_stack, box_stack,
                                               labels_np, boxes_np, nt, match_indices)
            losses = {
                "classification": [loss_dev[0, l, 0] for l in range(L)],
                "bbox_regression": [loss_dev[1, l, 0] for l in range(L)],
            }
            detr_output["loss"] = losses
        else:
            # TODO(synk): eval/detection path (score thresholding + batched NMS) needs
            # dynamic shapes and has no clean Pallas equivalent; not implemented here.
            raise NotImplementedError("Only the training path is implemented in Pallas.")
        return detr_output

    __call__ = forward


# ----------------------------------------------------------------------------
# demo
# ----------------------------------------------------------------------------
if __name__ == "__main__":
    key = jax.random.PRNGKey(0)
    L = model_config["decoder_layers"]
    B = 2
    Q = model_config["num_queries"]
    C = dataset_config["num_classes"]
    T_PER_IMAGE = 3

    k1, k2, k3 = jax.random.split(key, 3)
    pred_classes = jax.random.normal(k1, (L, B, Q, C), dtype=jnp.float32)
    # cxcywh boxes in (0, 1) so widths/heights are strictly positive
    pred_bboxes = jax.nn.sigmoid(jax.random.normal(k2, (L, B, Q, 4), dtype=jnp.float32))

    targets = []
    tkeys = jax.random.split(k3, B)
    for b in range(B):
        ka, kb, kc = jax.random.split(tkeys[b], 3)
        labels = jax.random.randint(ka, (T_PER_IMAGE,), 0, C - 1)  # foreground classes
        xy1 = jax.random.uniform(kb, (T_PER_IMAGE, 2)) * 0.5
        wh = 0.1 + jax.random.uniform(kc, (T_PER_IMAGE, 2)) * 0.4
        boxes = jnp.concatenate([xy1, xy1 + wh], axis=-1).astype(jnp.float32)  # valid xyxy
        targets.append({"labels": labels, "boxes": boxes})

    criterion = DETRLossPallas()
    out = criterion(pred_classes, pred_bboxes, targets, training=True)

    all_losses = out["loss"]["classification"] + out["loss"]["bbox_regression"]
    for v in all_losses:
        jax.block_until_ready(v)
        assert np.isfinite(float(v)), "non-finite loss"

    # second call exercises the cached (no re-trace / no re-build) path
    out2 = criterion(pred_classes, pred_bboxes, targets, training=True)
    jax.block_until_ready(out2["loss"]["classification"][0])

    print("KERNEL_OK")
</pallas_src>

<mosaic_0001>
module attributes {stable_mosaic.version = 11 : i64} {
  func.func @cost_kernel(%arg0: memref<8x128xf32, #tpu.memory_space<vmem>>, %arg1: memref<4x128xf32, #tpu.memory_space<vmem>>, %arg2: memref<8x1xi32, #tpu.memory_space<vmem>>, %arg3: memref<8x4xf32, #tpu.memory_space<vmem>>, %arg4: memref<8x128xbf16, #tpu.memory_space<vmem>>) attributes {dimension_semantics = [], scalar_prefetch = 0 : i64, scratch_operands = 0 : i64, tpu.core_type = #tpu.core_type<tc>} {
    %c0 = arith.constant 0 : index
    %c0_0 = arith.constant 0 : index
    %0 = vector.load %arg0[%c0, %c0_0] : memref<8x128xf32, #tpu.memory_space<vmem>>, vector<8x128xf32>
    %c0_1 = arith.constant 0 : index
    %c0_2 = arith.constant 0 : index
    %1 = vector.load %arg2[%c0_1, %c0_2] : memref<8x1xi32, #tpu.memory_space<vmem>>, vector<8x1xi32>
    %2 = vector.extract_strided_slice %0 {offsets = [0, 0], sizes = [1, 128], strides = [1, 1]} : vector<8x128xf32> to vector<1x128xf32>
    %3 = vector.extract_strided_slice %0 {offsets = [1, 0], sizes = [1, 128], strides = [1, 1]} : vector<8x128xf32> to vector<1x128xf32>
    %4 = arith.maximumf %2, %3 : vector<1x128xf32>
    %5 = vector.extract_strided_slice %0 {offsets = [2, 0], sizes = [1, 128], strides = [1, 1]} : vector<8x128xf32> to vector<1x128xf32>
    %6 = arith.maximumf %4, %5 : vector<1x128xf32>
    %7 = vector.extract_strided_slice %0 {offsets = [3, 0], sizes = [1, 128], strides = [1, 1]} : vector<8x128xf32> to vector<1x128xf32>
    %8 = arith.maximumf %6, %7 : vector<1x128xf32>
    %9 = vector.extract_strided_slice %0 {offsets = [4, 0], sizes = [1, 128], strides = [1, 1]} : vector<8x128xf32> to vector<1x128xf32>
    %10 = arith.maximumf %8, %9 : vector<1x128xf32>
    %11 = vector.extract_strided_slice %0 {offsets = [5, 0], sizes = [1, 128], strides = [1, 1]} : vector<8x128xf32> to vector<1x128xf32>
    %12 = arith.maximumf %10, %11 : vector<1x128xf32>
    %13 = vector.extract_strided_slice %0 {offsets = [6, 0], sizes = [1, 128], strides = [1, 1]} : vector<8x128xf32> to vector<1x128xf32>
    %14 = arith.maximumf %12, %13 : vector<1x128xf32>
    %15 = vector.extract_strided_slice %0 {offsets = [7, 0], sizes = [1, 128], strides = [1, 1]} : vector<8x128xf32> to vector<1x128xf32>
    %16 = arith.maximumf %14, %15 : vector<1x128xf32>
    %17 = vector.extract_strided_slice %0 {offsets = [0, 0], sizes = [1, 128], strides = [1, 1]} : vector<8x128xf32> to vector<1x128xf32>
    %18 = arith.subf %17, %16 : vector<1x128xf32>
    %19 = math.exp %18 : vector<1x128xf32>
    %20 = vector.extract_strided_slice %0 {offsets = [1, 0], sizes = [1, 128], strides = [1, 1]} : vector<8x128xf32> to vector<1x128xf32>
    %21 = arith.subf %20, %16 : vector<1x128xf32>
    %22 = math.exp %21 : vector<1x128xf32>
    %23 = vector.extract_strided_slice %0 {offsets = [2, 0], sizes = [1, 128], strides = [1, 1]} : vector<8x128xf32> to vector<1x128xf32>
    %24 = arith.subf %23, %16 : vector<1x128xf32>
    %25 = math.exp %24 : vector<1x128xf32>
    %26 = vector.extract_strided_slice %0 {offsets = [3, 0], sizes = [1, 128], strides = [1, 1]} : vector<8x128xf32> to vector<1x128xf32>
    %27 = arith.subf %26, %16 : vector<1x128xf32>
    %28 = math.exp %27 : vector<1x128xf32>
    %29 = vector.extract_strided_slice %0 {offsets = [4, 0], sizes = [1, 128], strides = [1, 1]} : vector<8x128xf32> to vector<1x128xf32>
    %30 = arith.subf %29, %16 : vector<1x128xf32>
    %31 = math.exp %30 : vector<1x128xf32>
    %32 = vector.extract_strided_slice %0 {offsets = [5, 0], sizes = [1, 128], strides = [1, 1]} : vector<8x128xf32> to vector<1x128xf32>
    %33 = arith.subf %32, %16 : vector<1x128xf32>
    %34 = math.exp %33 : vector<1x128xf32>
    %35 = vector.extract_strided_slice %0 {offsets = [6, 0], sizes = [1, 128], strides = [1, 1]} : vector<8x128xf32> to vector<1x128xf32>
    %36 = arith.subf %35, %16 : vector<1x128xf32>
    %37 = math.exp %36 : vector<1x128xf32>
    %38 = vector.extract_strided_slice %0 {offsets = [7, 0], sizes = [1, 128], strides = [1, 1]} : vector<8x128xf32> to vector<1x128xf32>
    %39 = arith.subf %38, %16 : vector<1x128xf32>
    %40 = math.exp %39 : vector<1x128xf32>
    %41 = arith.addf %19, %22 : vector<1x128xf32>
    %42 = arith.addf %41, %25 : vector<1x128xf32>
    %43 = arith.addf %42, %28 : vector<1x128xf32>
    %44 = arith.addf %43, %31 : vector<1x128xf32>
    %45 = arith.addf %44, %34 : vector<1x128xf32>
    %46 = arith.addf %45, %37 : vector<1x128xf32>
    %47 = arith.addf %46, %40 : vector<1x128xf32>
    %48 = tpu.reciprocal %47 {approx = true} : vector<1x128xf32> -> vector<1x128xf32>
    %c0_i32 = arith.constant 0 : i32
    %49 = vector.broadcast %c0_i32 : i32 to vector<8x1xi32>
    %50 = arith.cmpi eq, %1, %49 : vector<8x1xi32>
    %51 = arith.extui %50 : vector<8x1xi1> to vector<8x1xi32>
    %52 = arith.sitofp %51 : vector<8x1xi32> to vector<8x1xf32>
    %53 = vector.broadcast %52 : vector<8x1xf32> to vector<8x128xf32>
    %54 = vector.broadcast %19 : vector<1x128xf32> to vector<8x128xf32>
    %55 = arith.mulf %53, %54 : vector<8x128xf32>
    %c1_i32 = arith.constant 1 : i32
    %56 = vector.broadcast %c1_i32 : i32 to vector<8x1xi32>
    %57 = arith.cmpi eq, %1, %56 : vector<8x1xi32>
    %58 = arith.extui %57 : vector<8x1xi1> to vector<8x1xi32>
    %59 = arith.sitofp %58 : vector<8x1xi32> to vector<8x1xf32>
    %60 = vector.broadcast %59 : vector<8x1xf32> to vector<8x128xf32>
    %61 = vector.broadcast %22 : vector<1x128xf32> to vector<8x128xf32>
    %62 = arith.mulf %60, %61 : vector<8x128xf32>
    %63 = arith.addf %55, %62 : vector<8x128xf32>
    %c2_i32 = arith.constant 2 : i32
    %64 = vector.broadcast %c2_i32 : i32 to vector<8x1xi32>
    %65 = arith.cmpi eq, %1, %64 : vector<8x1xi32>
    %66 = arith.extui %65 : vector<8x1xi1> to vector<8x1xi32>
    %67 = arith.sitofp %66 : vector<8x1xi32> to vector<8x1xf32>
    %68 = vector.broadcast %67 : vector<8x1xf32> to vector<8x128xf32>
    %69 = vector.broadcast %25 : vector<1x128xf32> to vector<8x128xf32>
    %70 = arith.mulf %68, %69 : vector<8x128xf32>
    %71 = arith.addf %63, %70 : vector<8x128xf32>
    %c3_i32 = arith.constant 3 : i32
    %72 = vector.broadcast %c3_i32 : i32 to vector<8x1xi32>
    %73 = arith.cmpi eq, %1, %72 : vector<8x1xi32>
    %74 = arith.extui %73 : vector<8x1xi1> to vector<8x1xi32>
    %75 = arith.sitofp %74 : vector<8x1xi32> to vector<8x1xf32>
    %76 = vector.broadcast %75 : vector<8x1xf32> to vector<8x128xf32>
    %77 = vector.broadcast %28 : vector<1x128xf32> to vector<8x128xf32>
    %78 = arith.mulf %76, %77 : vector<8x128xf32>
    %79 = arith.addf %71, %78 : vector<8x128xf32>
    %c4_i32 = arith.constant 4 : i32
    %80 = vector.broadcast %c4_i32 : i32 to vector<8x1xi32>
    %81 = arith.cmpi eq, %1, %80 : vector<8x1xi32>
    %82 = arith.extui %81 : vector<8x1xi1> to vector<8x1xi32>
    %83 = arith.sitofp %82 : vector<8x1xi32> to vector<8x1xf32>
    %84 = vector.broadcast %83 : vector<8x1xf32> to vector<8x128xf32>
    %85 = vector.broadcast %31 : vector<1x128xf32> to vector<8x128xf32>
    %86 = arith.mulf %84, %85 : vector<8x128xf32>
    %87 = arith.addf %79, %86 : vector<8x128xf32>
    %c5_i32 = arith.constant 5 : i32
    %88 = vector.broadcast %c5_i32 : i32 to vector<8x1xi32>
    %89 = arith.cmpi eq, %1, %88 : vector<8x1xi32>
    %90 = arith.extui %89 : vector<8x1xi1> to vector<8x1xi32>
    %91 = arith.sitofp %90 : vector<8x1xi32> to vector<8x1xf32>
    %92 = vector.broadcast %91 : vector<8x1xf32> to vector<8x128xf32>
    %93 = vector.broadcast %34 : vector<1x128xf32> to vector<8x128xf32>
    %94 = arith.mulf %92, %93 : vector<8x128xf32>
    %95 = arith.addf %87, %94 : vector<8x128xf32>
    %c6_i32 = arith.constant 6 : i32
    %96 = vector.broadcast %c6_i32 : i32 to vector<8x1xi32>
    %97 = arith.cmpi eq, %1, %96 : vector<8x1xi32>
    %98 = arith.extui %97 : vector<8x1xi1> to vector<8x1xi32>
    %99 = arith.sitofp %98 : vector<8x1xi32> to vector<8x1xf32>
    %100 = vector.broadcast %99 : vector<8x1xf32> to vector<8x128xf32>
    %101 = vector.broadcast %37 : vector<1x128xf32> to vector<8x128xf32>
    %102 = arith.mulf %100, %101 : vector<8x128xf32>
    %103 = arith.addf %95, %102 : vector<8x128xf32>
    %c7_i32 = arith.constant 7 : i32
    %104 = vector.broadcast %c7_i32 : i32 to vector<8x1xi32>
    %105 = arith.cmpi eq, %1, %104 : vector<8x1xi32>
    %106 = arith.extui %105 : vector<8x1xi1> to vector<8x1xi32>
    %107 = arith.sitofp %106 : vector<8x1xi32> to vector<8x1xf32>
    %108 = vector.broadcast %107 : vector<8x1xf32> to vector<8x128xf32>
    %109 = vector.broadcast %40 : vector<1x128xf32> to vector<8x128xf32>
    %110 = arith.mulf %108, %109 : vector<8x128xf32>
    %111 = arith.addf %103, %110 : vector<8x128xf32>
    %cst = arith.constant -1.000000e+00 : f32
    %112 = vector.broadcast %cst : f32 to vector<1x128xf32>
    %113 = arith.mulf %48, %112 : vector<1x128xf32>
    %114 = vector.broadcast %113 : vector<1x128xf32> to vector<8x128xf32>
    %115 = arith.mulf %111, %114 : vector<8x128xf32>
    %c0_3 = arith.constant 0 : index
    %c0_4 = arith.constant 0 : index
    %116 = vector.load %arg1[%c0_3, %c0_4] : memref<4x128xf32, #tpu.memory_space<vmem>>, vector<4x128xf32>
    %117 = vector.extract_strided_slice %116 {offsets = [0, 0], sizes = [1, 128], strides = [1, 1]} : vector<4x128xf32> to vector<1x128xf32>
    %118 = vector.extract_strided_slice %116 {offsets = [1, 0], sizes = [1, 128], strides = [1, 1]} : vector<4x128xf32> to vector<1x128xf32>
    %119 = vector.extract_strided_slice %116 {offsets = [2, 0], sizes = [1, 128], strides = [1, 1]} : vector<4x128xf32> to vector<1x128xf32>
    %120 = vector.extract_strided_slice %116 {offsets = [3, 0], sizes = [1, 128], strides = [1, 1]} : vector<4x128xf32> to vector<1x128xf32>
    %c0_5 = arith.constant 0 : index
    %c0_6 = arith.constant 0 : index
    %121 = vector.load %arg3[%c0_5, %c0_6] : memref<8x4xf32, #tpu.memory_space<vmem>>, vector<8x4xf32>
    %122 = vector.extract_strided_slice %121 {offsets = [0, 0], sizes = [8, 1], strides = [1, 1]} : vector<8x4xf32> to vector<8x1xf32>
    %123 = vector.extract_strided_slice %121 {offsets = [0, 1], sizes = [8, 1], strides = [1, 1]} : vector<8x4xf32> to vector<8x1xf32>
    %124 = vector.extract_strided_slice %121 {offsets = [0, 2], sizes = [8, 1], strides = [1, 1]} : vector<8x4xf32> to vector<8x1xf32>
    %125 = vector.extract_strided_slice %121 {offsets = [0, 3], sizes = [8, 1], strides = [1, 1]} : vector<8x4xf32> to vector<8x1xf32>
    %126 = vector.broadcast %117 : vector<1x128xf32> to vector<8x128xf32>
    %127 = vector.broadcast %122 : vector<8x1xf32> to vector<8x128xf32>
    %128 = arith.subf %126, %127 : vector<8x128xf32>
    %129 = math.absf %128 : vector<8x128xf32>
    %130 = vector.broadcast %118 : vector<1x128xf32> to vector<8x128xf32>
    %131 = vector.broadcast %123 : vector<8x1xf32> to vector<8x128xf32>
    %132 = arith.subf %130, %131 : vector<8x128xf32>
    %133 = math.absf %132 : vector<8x128xf32>
    %134 = arith.addf %129, %133 : vector<8x128xf32>
    %135 = vector.broadcast %119 : vector<1x128xf32> to vector<8x128xf32>
    %136 = vector.broadcast %124 : vector<8x1xf32> to vector<8x128xf32>
    %137 = arith.subf %135, %136 : vector<8x128xf32>
    %138 = math.absf %137 : vector<8x128xf32>
    %139 = arith.addf %134, %138 : vector<8x128xf32>
    %140 = vector.broadcast %120 : vector<1x128xf32> to vector<8x128xf32>
    %141 = vector.broadcast %125 : vector<8x1xf32> to vector<8x128xf32>
    %142 = arith.subf %140, %141 : vector<8x128xf32>
    %143 = math.absf %142 : vector<8x128xf32>
    %144 = arith.addf %139, %143 : vector<8x128xf32>
    %cst_7 = arith.constant 5.000000e+00 : f32
    %145 = vector.broadcast %cst_7 : f32 to vector<8x128xf32>
    %146 = arith.mulf %145, %144 : vector<8x128xf32>
    %147 = arith.addf %115, %146 : vector<8x128xf32>
    %148 = arith.subf %119, %117 : vector<1x128xf32>
    %149 = arith.subf %120, %118 : vector<1x128xf32>
    %150 = arith.mulf %148, %149 : vector<1x128xf32>
    %151 = arith.subf %124, %122 : vector<8x1xf32>
    %152 = arith.subf %125, %123 : vector<8x1xf32>
    %153 = arith.mulf %151, %152 : vector<8x1xf32>
    %154 = vector.broadcast %119 : vector<1x128xf32> to vector<8x128xf32>
    %155 = vector.broadcast %124 : vector<8x1xf32> to vector<8x128xf32>
    %156 = arith.minimumf %154, %155 : vector<8x128xf32>
    %157 = vector.broadcast %117 : vector<1x128xf32> to vector<8x128xf32>
    %158 = vector.broadcast %122 : vector<8x1xf32> to vector<8x128xf32>
    %159 = arith.maximumf %157, %158 : vector<8x128xf32>
    %160 = arith.subf %156, %159 : vector<8x128xf32>
    %cst_8 = arith.constant 0.000000e+00 : f32
    %161 = vector.broadcast %cst_8 : f32 to vector<8x128xf32>
    %162 = arith.maximumf %160, %161 : vector<8x128xf32>
    %163 = vector.broadcast %120 : vector<1x128xf32> to vector<8x128xf32>
    %164 = vector.broadcast %125 : vector<8x1xf32> to vector<8x128xf32>
    %165 = arith.minimumf %163, %164 : vector<8x128xf32>
    %166 = vector.broadcast %118 : vector<1x128xf32> to vector<8x128xf32>
    %167 = vector.broadcast %123 : vector<8x1xf32> to vector<8x128xf32>
    %168 = arith.maximumf %166, %167 : vector<8x128xf32>
    %169 = arith.subf %165, %168 : vector<8x128xf32>
    %cst_9 = arith.constant 0.000000e+00 : f32
    %170 = vector.broadcast %cst_9 : f32 to vector<8x128xf32>
    %171 = arith.maximumf %169, %170 : vector<8x128xf32>
    %172 = arith.mulf %162, %171 : vector<8x128xf32>
    %173 = vector.broadcast %150 : vector<1x128xf32> to vector<8x128xf32>
    %174 = vector.broadcast %153 : vector<8x1xf32> to vector<8x128xf32>
    %175 = arith.addf %173, %174 : vector<8x128xf32>
    %176 = arith.subf %175, %172 : vector<8x128xf32>
    %cst_10 = arith.constant 1.000000e-07 : f32
    %177 = vector.broadcast %cst_10 : f32 to vector<8x128xf32>
    %178 = arith.addf %176, %177 : vector<8x128xf32>
    %179 = tpu.reciprocal %178 {approx = true} : vector<8x128xf32> -> vector<8x128xf32>
    %180 = arith.mulf %172, %179 : vector<8x128xf32>
    %181 = vector.broadcast %119 : vector<1x128xf32> to vector<8x128xf32>
    %182 = vector.broadcast %124 : vector<8x1xf32> to vector<8x128xf32>
    %183 = arith.maximumf %181, %182 : vector<8x128xf32>
    %184 = vector.broadcast %117 : vector<1x128xf32> to vector<8x128xf32>
    %185 = vector.broadcast %122 : vector<8x1xf32> to vector<8x128xf32>
    %186 = arith.minimumf %184, %185 : vector<8x128xf32>
    %187 = arith.subf %183, %186 : vector<8x128xf32>
    %188 = vector.broadcast %120 : vector<1x128xf32> to vector<8x128xf32>
    %189 = vector.broadcast %125 : vector<8x1xf32> to vector<8x128xf32>
    %190 = arith.maximumf %188, %189 : vector<8x128xf32>
    %191 = vector.broadcast %118 : vector<1x128xf32> to vector<8x128xf32>
    %192 = vector.broadcast %123 : vector<8x1xf32> to vector<8x128xf32>
    %193 = arith.minimumf %191, %192 : vector<8x128xf32>
    %194 = arith.subf %190, %193 : vector<8x128xf32>
    %195 = arith.mulf %187, %194 : vector<8x128xf32>
    %196 = arith.subf %195, %176 : vector<8x128xf32>
    %cst_11 = arith.constant 1.000000e-07 : f32
    %197 = vector.broadcast %cst_11 : f32 to vector<8x128xf32>
    %198 = arith.addf %195, %197 : vector<8x128xf32>
    %199 = tpu.reciprocal %198 {approx = true} : vector<8x128xf32> -> vector<8x128xf32>
    %200 = arith.mulf %196, %199 : vector<8x128xf32>
    %201 = arith.subf %180, %200 : vector<8x128xf32>
    %cst_12 = arith.constant 2.000000e+00 : f32
    %202 = vector.broadcast %cst_12 : f32 to vector<8x128xf32>
    %203 = arith.mulf %202, %201 : vector<8x128xf32>
    %204 = arith.subf %147, %203 : vector<8x128xf32>
    %205 = arith.truncf %204 : vector<8x128xf32> to vector<8x128xbf16>
    %c0_13 = arith.constant 0 : index
    %c0_14 = arith.constant 0 : index
    %206 = vector.load %arg4[%c0_13, %c0_14] : memref<8x128xbf16, #tpu.memory_space<vmem>>, vector<8x128xbf16>
    tpu.vector_store %arg4[%c0_13, %c0_14], %205 {strides = array<i32>} : memref<8x128xbf16, #tpu.memory_space<vmem>>, vector<8x128xbf16>,
    return
  }
}

</mosaic_0001>

<llo_original>
// kernel: fn.1
$region0: #{fn.1}
  #allocation0 [shape = 'u32[]', space=smem, size = 0x4, offset = 0x4, fixed_abs, tag = 'smem constant byte address 0x4 - core index']
  #allocation1 [shape = 'u32[144,128]{1,0:T(1,128)}', space=vmem, size = 0x12000, scoped, tag = 'internal scratch']
  %s0 = inlined_call_operand.vmem [shape: f32[8,128], index: 0, kind: input, shape index: {}]
  %s1 = inlined_call_operand.vmem [shape: f32[4,128], index: 1, kind: input, shape index: {}]
  %s2 = inlined_call_operand.vmem [shape: s32[8,1], index: 2, kind: input, shape index: {}]
  %s3 = inlined_call_operand.vmem [shape: f32[8,4], index: 3, kind: input, shape index: {}]
  %s4 = inlined_call_operand.hbm [shape: bf16[8,128], index: 4, kind: output, shape index: {}]
  %s5 = sld [smem:[#allocation0]]
  $region26: #{fn.1} parent=0
    _
  %s7 = ssub.s32 1, %s5
  %s8 = scalar_select 0, %s7, %s5
  $region1: #{fn.1} parent=0
    #allocation2 [shape = 'u8[2048]{0}', space=vmem, size = 0x800, scoped, tag = 'output window, operand 0, single buffered']
    #allocation3 [shape = 's32[1]{0}', space=sflag, size = 0x4, scoped, tag = 'scoped memory for fn.1']
    %9 = vsyncpa [#allocation3], 0
    // Predicated region
    $region2: #{fn.1} parent=1 // pred_check
      _
    $region3: #{fn.1} parent=1 // pred_check_branch
      %11 = sbr.rel (0) target = $region5
    $region4: #{fn.1} parent=1 // pred_region
      _
    $region5: #{fn.1} parent=1 // pred_fallthru
      _
    // Predicated region
    $region6: #{fn.1} parent=1 // pred_check
      _
    $region7: #{fn.1} parent=1 // pred_check_branch
      %13 = sbr.rel (0) target = $region9
    $region8: #{fn.1} parent=1 // pred_region
      _
    $region9: #{fn.1} parent=1 // pred_fallthru
      _
    // Predicated region
    $region10: #{fn.1} parent=1 // pred_check
      _
    $region11: #{fn.1} parent=1 // pred_check_branch
      %15 = sbr.rel (0) target = $region13
    $region12: #{fn.1} parent=1 // pred_region
      _
    $region13: #{fn.1} parent=1 // pred_fallthru
      _
    // Predicated region
    $region14: #{fn.1} parent=1 // pred_check
      _
    $region15: #{fn.1} parent=1 // pred_check_branch
      %17 = sbr.rel (0) target = $region17
    $region16: #{fn.1} parent=1 // pred_region
      _
    $region17: #{fn.1} parent=1 // pred_fallthru
      _
    %v18 = vld [vmem:[%s0] sm:$0xff]
    %v19 = vld [vmem:[%s2] sm:$0xff]
    %v21 = vrot.slane %v18, 1
    %v23 = vmax.f32 %v18, %v21
    %v24 = vrot.slane %v18, 2
    %v26 = vmax.f32 %v23, %v24
    %v27 = vrot.slane %v18, 3
    %v29 = vmax.f32 %v26, %v27
    %v30 = vrot.slane %v18, 4
    %v32 = vmax.f32 %v29, %v30
    %v33 = vrot.slane %v18, 5
    %v35 = vmax.f32 %v32, %v33
    %v36 = vrot.slane %v18, 6
    %v38 = vmax.f32 %v35, %v36
    %v39 = vrot.slane %v18, 7
    %v41 = vmax.f32 %v38, %v39
    %v42 = vsub.f32 %v18, %v41
    %v43 = vmul.f32 %v42, 1.442695
    %v44 = vpow.pop %v43
    %v46 = vrot.slane %v41, 7
    %v48 = vsub.f32 %v18, %v46
    %v49 = vmul.f32 %v48, 1.442695
    %v50 = vpow.pop %v49
    %v51 = vrot.slane %v41, 6
    %v53 = vsub.f32 %v18, %v51
    %v54 = vmul.f32 %v53, 1.442695
    %v55 = vpow.pop %v54
    %v56 = vrot.slane %v41, 5
    %v58 = vsub.f32 %v18, %v56
    %v59 = vmul.f32 %v58, 1.442695
    %v60 = vpow.pop %v59
    %v61 = vrot.slane %v41, 4
    %v63 = vsub.f32 %v18, %v61
    %v64 = vmul.f32 %v63, 1.442695
    %v65 = vpow.pop %v64
    %v66 = vrot.slane %v41, 3
    %v68 = vsub.f32 %v18, %v66
    %v69 = vmul.f32 %v68, 1.442695
    %v70 = vpow.pop %v69
    %v71 = vrot.slane %v41, 2
    %v73 = vsub.f32 %v18, %v71
    %v74 = vmul.f32 %v73, 1.442695
    %v75 = vpow.pop %v74
    %v76 = vrot.slane %v41, 1
    %v78 = vsub.f32 %v18, %v76
    %v79 = vmul.f32 %v78, 1.442695
    %v80 = vpow.pop %v79
    %v82 = vrot.slane %v50, 1
    %v84 = vadd.f32 %v44, %v82
    %v86 = vrot.slane %v55, 2
    %v88 = vadd.f32 %v84, %v86
    %v90 = vrot.slane %v60, 3
    %v92 = vadd.f32 %v88, %v90
    %v94 = vrot.slane %v65, 4
    %v96 = vadd.f32 %v92, %v94
    %v98 = vrot.slane %v70, 5
    %v100 = vadd.f32 %v96, %v98
    %v102 = vrot.slane %v75, 6
    %v104 = vadd.f32 %v100, %v102
    %v106 = vrot.slane %v80, 7
    %v108 = vadd.f32 %v104, %v106
    %v109 = vrcp.pop %v108
    %vm110 = vcmp.eq.s32.totalorder %v19, 0
    %v111 = vsel %vm110, 1, 0
    %v112 = vcvt.s32.f32 %v111
    %114 = vset.pattern.permute.xlu0 0
    %115 = vperm.xlu0 %114, %v112
    %v116 = vpop.permute.xlu0 %115
    %v118 = vlaneseq
    %v119 = vshrl.u32 %v118, 7
    %v120 = vsub.s32 0, %v119
    %v121 = vrot.slane %v44, %v120
    %v122 = vmul.f32 %v116, %v121
    %vm123 = vcmp.eq.s32.totalorder %v19, 1
    %v124 = vsel %vm123, 1, 0
    %v125 = vcvt.s32.f32 %v124
    %127 = vset.pattern.permute.xlu0 0
    %128 = vperm.xlu0 %127, %v125
    %v129 = vpop.permute.xlu0 %128
    %v131 = vlaneseq
    %v132 = vshrl.u32 %v131, 7
    %v133 = vsub.s32 1, %v132
    %v134 = vrot.slane %v50, %v133
    %v135 = vmul.f32 %v129, %v134
    %v136 = vadd.f32 %v122, %v135
    %vm137 = vcmp.eq.s32.totalorder %v19, 2
    %v138 = vsel %vm137, 1, 0
    %v139 = vcvt.s32.f32 %v138
    %141 = vset.pattern.permute.xlu0 0
    %142 = vperm.xlu0 %141, %v139
    %v143 = vpop.permute.xlu0 %142
    %v145 = vlaneseq
    %v146 = vshrl.u32 %v145, 7
    %v147 = vsub.s32 2, %v146
    %v148 = vrot.slane %v55, %v147
    %v149 = vmul.f32 %v143, %v148
    %v150 = vadd.f32 %v136, %v149
    %vm151 = vcmp.eq.s32.totalorder %v19, 3
    %v152 = vsel %vm151, 1, 0
    %v153 = vcvt.s32.f32 %v152
    %155 = vset.pattern.permute.xlu0 0
    %156 = vperm.xlu0 %155, %v153
    %v157 = vpop.permute.xlu0 %156
    %v159 = vlaneseq
    %v160 = vshrl.u32 %v159, 7
    %v161 = vsub.s32 3, %v160
    %v162 = vrot.slane %v60, %v161
    %v163 = vmul.f32 %v157, %v162
    %v164 = vadd.f32 %v150, %v163
    %vm165 = vcmp.eq.s32.totalorder %v19, 4
    %v166 = vsel %vm165, 1, 0
    %v167 = vcvt.s32.f32 %v166
    %169 = vset.pattern.permute.xlu0 0
    %170 = vperm.xlu0 %169, %v167
    %v171 = vpop.permute.xlu0 %170
    %v173 = vlaneseq
    %v174 = vshrl.u32 %v173, 7
    %v175 = vsub.s32 4, %v174
    %v176 = vrot.slane %v65, %v175
    %v177 = vmul.f32 %v171, %v176
    %v178 = vadd.f32 %v164, %v177
    %vm179 = vcmp.eq.s32.totalorder %v19, 5
    %v180 = vsel %vm179, 1, 0
    %v181 = vcvt.s32.f32 %v180
    %183 = vset.pattern.permute.xlu0 0
    %184 = vperm.xlu0 %183, %v181
    %v185 = vpop.permute.xlu0 %184
    %v187 = vlaneseq
    %v188 = vshrl.u32 %v187, 7
    %v189 = vsub.s32 5, %v188
    %v190 = vrot.slane %v70, %v189
    %v191 = vmul.f32 %v185, %v190
    %v192 = vadd.f32 %v178, %v191
    %vm193 = vcmp.eq.s32.totalorder %v19, 6
    %v194 = vsel %vm193, 1, 0
    %v195 = vcvt.s32.f32 %v194
    %197 = vset.pattern.permute.xlu0 0
    %198 = vperm.xlu0 %197, %v195
    %v199 = vpop.permute.xlu0 %198
    %v201 = vlaneseq
    %v202 = vshrl.u32 %v201, 7
    %v203 = vsub.s32 6, %v202
    %v204 = vrot.slane %v75, %v203
    %v205 = vmul.f32 %v199, %v204
    %v206 = vadd.f32 %v192, %v205
    %vm207 = vcmp.eq.s32.totalorder %v19, 7
    %v208 = vsel %vm207, 1, 0
    %v209 = vcvt.s32.f32 %v208
    %211 = vset.pattern.permute.xlu0 0
    %212 = vperm.xlu0 %211, %v209
    %v213 = vpop.permute.xlu0 %212
    %v215 = vlaneseq
    %v216 = vshrl.u32 %v215, 7
    %v217 = vsub.s32 7, %v216
    %v218 = vrot.slane %v80, %v217
    %v219 = vmul.f32 %v213, %v218
    %v220 = vadd.f32 %v206, %v219
    %v221 = vmul.f32 %v109, -1.0
    %v222 = vlaneseq
    %v223 = vshrl.u32 %v222, 7
    %v224 = vsub.s32 0, %v223
    %v225 = vrot.slane %v221, %v224
    %v226 = vmul.f32 %v220, %v225
    %v227 = vld [vmem:[%s1] sm:$0xf]
    %v228 = vld [vmem:[%s3] sm:$0xff]
    %v229 = vlaneseq
    %v230 = vshrl.u32 %v229, 7
    %v231 = vsub.s32 0, %v230
    %v232 = vrot.slane %v227, %v231
    %234 = vset.pattern.permute.xlu0 0
    %235 = vperm.xlu0 %234, %v228
    %v236 = vpop.permute.xlu0 %235
    %v238 = vsub.f32 %v232, %v236
    %v239 = vand.u32 2147483647, %v238
    %v240 = vlaneseq
    %v241 = vshrl.u32 %v240, 7
    %v242 = vsub.s32 1, %v241
    %v243 = vrot.slane %v227, %v242
    %244 = vset.pattern.permute.xlu0 1
    %245 = vperm.xlu0 %244, %v228
    %v246 = vpop.permute.xlu0 %245
    %v248 = vsub.f32 %v243, %v246
    %v249 = vand.u32 2147483647, %v248
    %v250 = vadd.f32 %v239, %v249
    %v251 = vlaneseq
    %v252 = vshrl.u32 %v251, 7
    %v253 = vsub.s32 2, %v252
    %v254 = vrot.slane %v227, %v253
    %255 = vset.pattern.permute.xlu0 2
    %256 = vperm.xlu0 %255, %v228
    %v257 = vpop.permute.xlu0 %256
    %v259 = vsub.f32 %v254, %v257
    %v260 = vand.u32 2147483647, %v259
    %v261 = vadd.f32 %v250, %v260
    %v262 = vlaneseq
    %v263 = vshrl.u32 %v262, 7
    %v264 = vsub.s32 3, %v263
    %v265 = vrot.slane %v227, %v264
    %266 = vset.pattern.permute.xlu0 3
    %267 = vperm.xlu0 %266, %v228
    %v268 = vpop.permute.xlu0 %267
    %v270 = vsub.f32 %v265, %v268
    %v271 = vand.u32 2147483647, %v270
    %v272 = vadd.f32 %v261, %v271
    %v273 = vmul.f32 %v272, 5.0
    %v274 = vadd.f32 %v226, %v273
    %v276 = vrot.slane %v227, 6
    %v278 = vsub.f32 %v227, %v276
    %v280 = vrot.slane %v278, 1
    %v282 = vmul.f32 %v278, %v280
    %283 = vrot.lane.b32.xlu0 %v228, 2
    %v284 = vpop.permute.xlu0 %283
    %v286 = vsub.f32 %v228, %v284
    %288 = vrot.lane.b32.xlu0 %v286, 127
    %v289 = vpop.permute.xlu0 %288
    %v291 = vmul.f32 %v286, %v289
    %v292 = vmin.f32 %v254, %v257
    %v293 = vmax.f32 %v232, %v236
    %v294 = vsub.f32 %v292, %v293
    %v295 = vmax.f32 %v294, 0.0
    %v296 = vmin.f32 %v265, %v268
    %v297 = vmax.f32 %v243, %v246
    %v298 = vsub.f32 %v296, %v297
    %v299 = vmax.f32 %v298, 0.0
    %v300 = vmul.f32 %v295, %v299
    %v301 = vlaneseq
    %v302 = vshrl.u32 %v301, 7
    %v303 = vsub.s32 2, %v302
    %v304 = vrot.slane %v282, %v303
    %306 = vset.pattern.permute.xlu0 2
    %307 = vperm.xlu0 %306, %v291
    %v308 = vpop.permute.xlu0 %307
    %v310 = vadd.f32 %v304, %v308
    %v311 = vsub.f32 %v310, %v300
    %v312 = vadd.f32 %v311, 1e-07
    %v313 = vrcp.pop %v312
    %v314 = vmul.f32 %v300, %v313
    %v315 = vmax.f32 %v254, %v257
    %v316 = vmin.f32 %v232, %v236
    %v317 = vsub.f32 %v315, %v316
    %v318 = vmax.f32 %v265, %v268
    %v319 = vmin.f32 %v243, %v246
    %v320 = vsub.f32 %v318, %v319
    %v321 = vmul.f32 %v317, %v320
    %v322 = vsub.f32 %v321, %v311
    %v323 = vadd.f32 %v321, 1e-07
    %v324 = vrcp.pop %v323
    %v325 = vmul.f32 %v322, %v324
    %v326 = vsub.f32 %v314, %v325
    %v327 = vmul.f32 %v326, 2.0
    %v328 = vsub.f32 %v274, %v327
    %v329 = vpack.c.bf16 %v328, %v328
    %330 = vst [vmem:[#allocation2] sm:$0xf] %v329
    // Predicated region
    $region18: #{fn.1} parent=1 // pred_check
      _
    $region19: #{fn.1} parent=1 // pred_check_branch
      %332 = sbr.rel (0) target = $region21
    $region20: #{fn.1} parent=1 // pred_region
      %s334 = ssub.s32 64, 64
      %335 = vsyncadd [#allocation3], %s334
      %s337 = sshll.u32 [#allocation2], 4
      %s338 = int_to_ptr.vmem [resolvable:$true] %s337
      %340 = dma.vmem_to_hbm [thread:$0]  %s338, 64, %s4, [#allocation3]
    $region21: #{fn.1} parent=1 // pred_fallthru
      _
    // Predicated region
    $region22: #{fn.1} parent=1 // pred_check
      _
    $region23: #{fn.1} parent=1 // pred_check_branch
      %342 = sbr.rel (0) target = $region25
    $region24: #{fn.1} parent=1 // pred_region
      %343 = dma.done [#allocation3], 64
    $region25: #{fn.1} parent=1 // pred_fallthru
      _
    %344 = vsyncpa [#allocation3], 1

</llo_original>
